<compile_context>
chip_gen: v7x
topology: tpu7x:2x2x1
jax: 0.10.0
libtpu: 0.0.40
codegen_flags: <defaults>
</compile_context>

<pallas_src>
import functools
import math

import jax
import jax.numpy as jnp
from jax.experimental import pallas as pl
from jax.experimental.pallas import tpu as pltpu


# ----------------------------------------------------------------------------
# helpers
# ----------------------------------------------------------------------------

def _round_up(x, m):
    return -(-x // m) * m


def _vmem_capacity_bytes(default=64 << 20):
    """Physical per-core VMEM; defaults to the smallest (v7x) if unavailable."""
    try:
        return int(pltpu.get_tpu_info().vmem_capacity_bytes)
    except Exception:
        return default


# ----------------------------------------------------------------------------
# Main path: LUT gather kernel (MLP+LayerNorm hoisted into a per-bin table)
# ----------------------------------------------------------------------------

def _lut_gather_kernel(vel_ref, table_ref, out_ref, *, num_valid_bins):
    nb, _ = table_ref.shape
    tm = out_ref.shape[0]

    bins = vel_ref[...]                                    # (1, tm) int32, lane-dense
    # Safety clamp: bins are expected in [0, max_bins).
    bins = jnp.clip(bins, 0, num_valid_bins - 1)

    # Transposed one-hot: onehot_t[b, t] = (bins[t] == b).  Comparing against a
    # sublane iota means the lane-dense bins row needs no relayout.
    bin_ids = jax.lax.broadcasted_iota(jnp.int32, (nb, tm), 0)
    onehot_t = (bins == bin_ids).astype(jnp.float32)       # (nb, tm)

    # MXU "gather": contract the bin axis (dim 0 of both operands) so the
    # result lands directly as (tm, E) with E lane-dense.
    y = jax.lax.dot_general(
        onehot_t, table_ref[...],
        dimension_numbers=(((0,), (0,)), ((), ())),
        preferred_element_type=jnp.float32)                # (tm, E)

    out_ref[...] = y.astype(out_ref.dtype)


def _build_lut(params, max_bins, nb_pad):
    """Exact reference math over all bin values (tiny, one-time)."""
    w1, b1, w2, b2, gamma, beta = params
    w1 = w1.reshape(1, -1)
    x = jnp.arange(nb_pad, dtype=jnp.float32)[:, None]     # (nb_pad, 1)
    if max_bins > 0:
        x = x / jnp.float32(max_bins)
    h = x @ w1 + b1
    h = 0.5 * h * (1.0 + jax.lax.erf(h * (1.0 / math.sqrt(2.0))))
    y = h @ w2 + b2
    mean = jnp.mean(y, axis=-1, keepdims=True)
    var = jnp.mean((y - mean) ** 2, axis=-1, keepdims=True)
    return (y - mean) * jax.lax.rsqrt(var + 1e-5) * gamma + beta   # (nb_pad, E) f32


def _choose_tm_lut(n_tokens, embed_dim, nb_pad, *, budget, tm_max=4096):
    per_token = 4 * (2 * embed_dim      # output block, double-buffered
                     + 2 * 8            # (1, tm) bins block (sublane-padded to 8), x2
                     + 2 * nb_pad       # iota + one-hot temporaries
                     + embed_dim)       # f32 matmul result
    fixed = 2 * nb_pad * embed_dim * 4  # resident LUT, double-buffered
    tm = max(budget - fixed, 0) // max(per_token, 1)
    tm = max(128, min(tm_max, (tm // 128) * 128))
    tm = min(tm, _round_up(n_tokens, 128))
    return tm


def _velocity_embedding_lut(velocity_bins, params, *, max_bins, tm, out_dtype):
    embed_dim = params[2].shape[1]
    B, S = velocity_bins.shape
    N = B * S

    num_bins = int(math.ceil(max_bins))            # valid bins: 0 .. num_bins-1
    nb_pad = max(8, _round_up(num_bins, 8))        # sublane-aligned rows / matmul K

    vmem_cap = (3 * _vmem_capacity_bytes()) // 4   # 48 MiB on v7x, 96 MiB on v5e/v6e
    if tm is None:
        tm = _choose_tm_lut(N, embed_dim, nb_pad, budget=min(24 << 20, vmem_cap // 2))

    n_steps = pl.cdiv(N, tm)
    n_pad = n_steps * tm

    # Lane-dense (1, N_pad) int32 bins row: one contiguous DMA per block.
    vel = velocity_bins.reshape(1, N).astype(jnp.int32)
    if n_pad != N:
        vel = jnp.pad(vel, ((0, 0), (0, n_pad - N)))

    table = _build_lut(params, max_bins, nb_pad)

    est_vmem = 4 * (2 * tm * embed_dim             # output double-buffer
                    + 2 * 8 * tm                   # bins block double-buffer
                    + 2 * nb_pad * embed_dim       # LUT double-buffer
                    + tm * (2 * nb_pad + embed_dim))  # in-kernel temporaries
    vmem_limit = int(min(vmem_cap, max(32 << 20, 3 * est_vmem // 2)))

    kernel = functools.partial(_lut_gather_kernel, num_valid_bins=num_bins)

    out = pl.pallas_call(
        kernel,
        out_shape=jax.ShapeDtypeStruct((n_pad, embed_dim), out_dtype),
        grid_spec=pltpu.PrefetchScalarGridSpec(
            num_scalar_prefetch=0,
            grid=(n_steps,),
            in_specs=[
                pl.BlockSpec((1, tm), lambda i: (0, i)),              # bins, lane-dense
                pl.BlockSpec((nb_pad, embed_dim), lambda i: (0, 0)),  # resident LUT
            ],
            out_specs=pl.BlockSpec((tm, embed_dim), lambda i: (i, 0)),
        ),
        compiler_params=pltpu.CompilerParams(
            dimension_semantics=("parallel",),
            vmem_limit_bytes=vmem_limit),
    )(vel, table)

    if n_pad != N:
        out = out[:N]
    return out.reshape(B, S, embed_dim)


# ----------------------------------------------------------------------------
# Fallback path: direct-compute kernel (max_bins <= 0 or non-integer bins)
# ----------------------------------------------------------------------------

def _mlp_kernel(vel_ref, w1_ref, b1_ref, w2_ref, b2_ref, gamma_ref, beta_ref,
                out_ref):
    # vel_ref: (tm, 1) int32 raw bins (1/max_bins already folded into W1).
    x = vel_ref[...].astype(jnp.float32)                     # (tm, 1)

    # Linear(1, H): K=1 contraction -> VPU broadcast multiply, not MXU.
    h = x * w1_ref[...] + b1_ref[...]                         # (tm, H)

    # GELU (exact, erf-based; matches torch.nn.GELU default).
    h = 0.5 * h * (1.0 + jax.lax.erf(h * (1.0 / math.sqrt(2.0))))

    # Linear(H, E) on the MXU with f32 accumulation.
    y = jnp.dot(h, w2_ref[...], preferred_element_type=jnp.float32) + b2_ref[...]

    # LayerNorm over last dim (eps = 1e-5), two-pass variance (no cancellation).
    mean = jnp.mean(y, axis=-1, keepdims=True)
    d = y - mean
    var = jnp.mean(d * d, axis=-1, keepdims=True)
    inv = jax.lax.rsqrt(var + 1e-5)
    out_ref[...] = (d * inv * gamma_ref[...] + beta_ref[...]).astype(out_ref.dtype)


def _choose_tm_mlp(n_tokens, hidden, embed_dim, *, budget, tm_max=2048):
    per_token = 4 * (2 * embed_dim          # output block, double-buffered
                     + 2 * 128              # (tm, 1) i32 block is lane-padded to 128, x2
                     + hidden + embed_dim)  # h / y temporaries
    tm = budget // max(per_token, 1)
    tm = max(8, min(tm_max, (tm // 8) * 8))
    tm = min(tm, _round_up(n_tokens, 8))
    return tm


def _velocity_embedding_mlp(velocity_bins, params, *, max_bins, tm, out_dtype):
    w1, b1, w2, b2, gamma, beta = params
    w1 = w1.reshape(1, -1)
    hidden = w1.shape[1]
    embed_dim = w2.shape[1]
    B, S = velocity_bins.shape
    N = B * S

    vmem_cap = (3 * _vmem_capacity_bytes()) // 4
    if tm is None:
        tm = _choose_tm_mlp(N, hidden, embed_dim, budget=min(24 << 20, vmem_cap // 2))

    n_steps = pl.cdiv(N, tm)
    n_pad = n_steps * tm

    vel = velocity_bins.reshape(N, 1).astype(jnp.int32)
    if n_pad != N:
        vel = jnp.pad(vel, ((0, n_pad - N), (0, 0)))

    # Fold 1/max_bins into the first-layer weight (tiny, one-time host op).
    w1_eff = w1 * jnp.float32(1.0 / max_bins) if max_bins > 0 else w1
    b1_2d = b1.reshape(1, hidden)
    b2_2d = b2.reshape(1, embed_dim)
    gamma_2d = gamma.reshape(1, embed_dim)
    beta_2d = beta.reshape(1, embed_dim)

    est_vmem = 4 * (2 * tm * embed_dim
                    + 2 * tm * 128                       # lane-padded (tm,1) input, x2
                    + 2 * (hidden + hidden * embed_dim + 3 * embed_dim)
                    + tm * (hidden + embed_dim))
    vmem_limit = int(min(vmem_cap, max(32 << 20, 3 * est_vmem // 2)))

    out = pl.pallas_call(
        _mlp_kernel,
        out_shape=jax.ShapeDtypeStruct((n_pad, embed_dim), out_dtype),
        grid_spec=pltpu.PrefetchScalarGridSpec(
            num_scalar_prefetch=0,
            grid=(n_steps,),
            in_specs=[
                pl.BlockSpec((tm, 1), lambda i: (i, 0)),               # bins column
                pl.BlockSpec((1, hidden), lambda i: (0, 0)),           # W1 / max_bins
                pl.BlockSpec((1, hidden), lambda i: (0, 0)),           # b1
                pl.BlockSpec((hidden, embed_dim), lambda i: (0, 0)),   # W2
                pl.BlockSpec((1, embed_dim), lambda i: (0, 0)),        # b2
                pl.BlockSpec((1, embed_dim), lambda i: (0, 0)),        # gamma
                pl.BlockSpec((1, embed_dim), lambda i: (0, 0)),        # beta
            ],
            out_specs=pl.BlockSpec((tm, embed_dim), lambda i: (i, 0)),
        ),
        compiler_params=pltpu.CompilerParams(
            dimension_semantics=("parallel",),
            vmem_limit_bytes=vmem_limit),
    )(vel, w1_eff, b1_2d, w2, b2_2d, gamma_2d, beta_2d)

    if n_pad != N:
        out = out[:N]
    return out.reshape(B, S, embed_dim)


# ----------------------------------------------------------------------------
# Public entry point
# ----------------------------------------------------------------------------

def velocity_embedding(velocity_bins, params, *, max_bins, tm=None,
                       out_dtype=jnp.float32, lut_max_bins=4096):
    """velocity_bins: (B, S) int array.  Returns (B, S, embed_dim) out_dtype.

    out_dtype=jnp.bfloat16 halves the dominant HBM writeback for inference
    paths; default f32 matches the PyTorch reference.
    """
    max_bins = float(max_bins)
    use_lut = (max_bins > 0
               and jnp.issubdtype(velocity_bins.dtype, jnp.integer)
               and int(math.ceil(max_bins)) <= lut_max_bins)
    if use_lut:
        return _velocity_embedding_lut(velocity_bins, params, max_bins=max_bins,
                                       tm=tm, out_dtype=out_dtype)
    return _velocity_embedding_mlp(velocity_bins, params, max_bins=max_bins,
                                   tm=tm, out_dtype=out_dtype)


# ----------------------------------------------------------------------------
# Parameter init + pure-JAX reference
# ----------------------------------------------------------------------------

def init_params(key, embed_dim):
    """Deterministic init mirroring the PyTorch module's parameter shapes."""
    hidden = embed_dim // 2
    k1, k2, k3, k4 = jax.random.split(key, 4)
    bound1 = 1.0 / math.sqrt(1.0)       # nn.Linear(1, H) default init
    w1 = jax.random.uniform(k1, (1, hidden), jnp.float32, -bound1, bound1)
    b1 = jax.random.uniform(k2, (hidden,), jnp.float32, -bound1, bound1)
    bound2 = 1.0 / math.sqrt(hidden)    # nn.Linear(H, E) default init
    w2 = jax.random.uniform(k3, (hidden, embed_dim), jnp.float32, -bound2, bound2)
    b2 = jax.random.uniform(k4, (embed_dim,), jnp.float32, -bound2, bound2)
    gamma = jnp.ones((embed_dim,), jnp.float32)   # LayerNorm weight
    beta = jnp.zeros((embed_dim,), jnp.float32)   # LayerNorm bias
    return (w1, b1, w2, b2, gamma, beta)


def _reference(velocity_bins, params, max_bins):
    """Pure-JAX reference mirroring the PyTorch module."""
    w1, b1, w2, b2, gamma, beta = params
    vel = velocity_bins.astype(jnp.float32)
    if max_bins > 0:
        vel = vel / jnp.float32(max_bins)
    x = vel[..., None]
    h = x @ w1.reshape(1, -1) + b1
    h = 0.5 * h * (1.0 + jax.lax.erf(h / math.sqrt(2.0)))
    y = h @ w2 + b2
    mean = jnp.mean(y, axis=-1, keepdims=True)
    var = jnp.mean((y - mean) ** 2, axis=-1, keepdims=True)
    return (y - mean) * jax.lax.rsqrt(var + 1e-5) * gamma + beta


if __name__ == "__main__":
    embed_dim = 128          # lane-dense output (multiple of 128)
    max_bins = 128.0
    B, S = 2, 8

    key = jax.random.PRNGKey(0)
    kp, kx = jax.random.split(key)
    params = init_params(kp, embed_dim)
    velocity_bins = jax.random.randint(kx, (B, S), 0, 128, dtype=jnp.int32)

    # Main LUT-gather path (max_bins > 0, integer bins).
    out = velocity_embedding(velocity_bins, params, max_bins=max_bins)
    out = jax.block_until_ready(out)
    ref = _reference(velocity_bins, params, max_bins)
    assert out.shape == (B, S, embed_dim)
    assert jnp.allclose(out, ref, atol=1e-4, rtol=1e-4), "LUT path mismatch"

    # Direct-compute fallback path (max_bins <= 0 -> raw bins, no LUT).
    out2 = velocity_embedding(velocity_bins, params, max_bins=0.0)
    out2 = jax.block_until_ready(out2)
    ref2 = _reference(velocity_bins, params, 0.0)
    assert out2.shape == (B, S, embed_dim)
    assert jnp.allclose(out2, ref2, atol=1e-4, rtol=1e-4), "MLP path mismatch"

    print("KERNEL_OK")
</pallas_src>

<mosaic_0001>
module attributes {stable_mosaic.version = 11 : i64} {
  func.func @_lut_gather_kernel(%arg0: i32, %arg1: memref<1x128xi32, #tpu.memory_space<vmem>>, %arg2: memref<128x128xf32, #tpu.memory_space<vmem>>, %arg3: memref<128x128xf32, #tpu.memory_space<vmem>>) attributes {dimension_semantics = [#tpu.dimension_semantics<parallel>], iteration_bounds = array<i64: 1>, scalar_prefetch = 0 : i64, scratch_operands = 0 : i64, tpu.core_type = #tpu.core_type<tc>, window_params = [{transform_indices = @transform_0, window_bounds = array<i64: 1, 128>}, {pipeline_mode = #tpu.pipeline_mode<synchronous>, transform_indices = @transform_1, window_bounds = array<i64: 128, 128>}, {transform_indices = @transform_2, window_bounds = array<i64: 128, 128>}]} {
    %c0 = arith.constant 0 : index
    %c0_0 = arith.constant 0 : index
    %0 = vector.load %arg1[%c0, %c0_0] : memref<1x128xi32, #tpu.memory_space<vmem>>, vector<1x128xi32>
    %c0_i32 = arith.constant 0 : i32
    %c127_i32 = arith.constant 127 : i32
    %1 = vector.broadcast %c0_i32 : i32 to vector<1x128xi32>
    %2 = arith.maxsi %1, %0 : vector<1x128xi32>
    %3 = vector.broadcast %c127_i32 : i32 to vector<1x128xi32>
    %4 = arith.minsi %3, %2 : vector<1x128xi32>
    %5 = tpu.iota {dimensions = array<i32: 0>} : vector<128x128xi32>
    %6 = vector.broadcast %4 : vector<1x128xi32> to vector<128x128xi32>
    %7 = arith.cmpi eq, %6, %5 : vector<128x128xi32>
    %8 = arith.extui %7 : vector<128x128xi1> to vector<128x128xi32>
    %9 = arith.sitofp %8 : vector<128x128xi32> to vector<128x128xf32>
    %c0_1 = arith.constant 0 : index
    %c0_2 = arith.constant 0 : index
    %10 = vector.load %arg2[%c0_1, %c0_2] : memref<128x128xf32, #tpu.memory_space<vmem>>, vector<128x128xf32>
    %cst = arith.constant dense<0.000000e+00> : vector<128x128xf32>
    %11 = tpu.matmul %9, %10, %cst {dimension_numbers = #tpu.dot_dimension_numbers<[0], [0], [1], [1], [0, 1, 1, 1], [], []>} : vector<128x128xf32>, vector<128x128xf32>, vector<128x128xf32> -> vector<128x128xf32>
    %c0_3 = arith.constant 0 : index
    %c0_4 = arith.constant 0 : index
    %12 = vector.load %arg3[%c0_3, %c0_4] : memref<128x128xf32, #tpu.memory_space<vmem>>, vector<128x128xf32>
    tpu.vector_store %arg3[%c0_3, %c0_4], %11 {strides = array<i32>} : memref<128x128xf32, #tpu.memory_space<vmem>>, vector<128x128xf32>,
    return
  }
  func.func @transform_0(%arg0: i32) -> (i32, i32) {
    %c0_i32 = arith.constant 0 : i32
    %c0_i32_0 = arith.constant 0 : i32
    return %c0_i32, %arg0 : i32, i32
  }
  func.func @transform_1(%arg0: i32) -> (i32, i32) {
    %c0_i32 = arith.constant 0 : i32
    %c0_i32_0 = arith.constant 0 : i32
    %c0_i32_1 = arith.constant 0 : i32
    return %c0_i32, %c0_i32_0 : i32, i32
  }
  func.func @transform_2(%arg0: i32) -> (i32, i32) {
    %c0_i32 = arith.constant 0 : i32
    %c0_i32_0 = arith.constant 0 : i32
    return %arg0, %c0_i32 : i32, i32
  }
}

</mosaic_0001>

<llo_original>
// kernel: tpu_custom_call.1
$region0: #{tpu_custom_call.1}
  #allocation0 [shape = 'u32[]', space=smem, size = 0x4, offset = 0x4, fixed_abs, tag = 'smem constant byte address 0x4 - core index']
  #allocation1 [shape = 'u32[144,128]{1,0:T(1,128)}', space=vmem, size = 0x12000, scoped, tag = 'internal scratch']
  %s0 = inlined_call_operand.hbm [shape: s32[1,128], index: 0, kind: input, shape index: {}]
  %s1 = inlined_call_operand.hbm [shape: f32[128,128], index: 1, kind: input, shape index: {}]
  %s2 = inlined_call_operand.hbm [shape: f32[128,128], index: 2, kind: output, shape index: {}]
  %s3 = sld [smem:[#allocation0]]
  $region26: #{tpu_custom_call.1} parent=0
    _
  %s5 = ssub.s32 1, %s3
  %s6 = scalar_select 0, %s5, %s3
  $region1: #{tpu_custom_call.1} parent=0
    #allocation2 [shape = 'u8[512]{0}', space=vmem, size = 0x400, scoped, tag = 'input window, operand 0, single buffered']
    #allocation3 [shape = 's32[1]{0}', space=sflag, size = 0x4, scoped, tag = 'scoped memory for tpu_custom_call.1']
    #allocation4 [shape = 's32[1]{0}', space=sflag, size = 0x4, scoped, tag = 'scoped memory for tpu_custom_call.1']
    #allocation5 [shape = 'u8[65536]{0}', space=vmem, size = 0x10000, scoped, tag = 'input window, operand 1, single buffered']
    #allocation6 [shape = 's32[1]{0}', space=sflag, size = 0x4, scoped, tag = 'scoped memory for tpu_custom_call.1']
    #allocation7 [shape = 'u8[65536]{0}', space=vmem, size = 0x10000, scoped, tag = 'output window, operand 0, single buffered']
    %7 = vsyncpa [#allocation3], 0
    %8 = vsyncpa [#allocation6], 0
    %9 = vsyncpa [#allocation4], 0
    // Predicated region
    $region2: #{tpu_custom_call.1} parent=1 // pred_check
      _
    $region3: #{tpu_custom_call.1} parent=1 // pred_check_branch
      %11 = sbr.rel (0) target = $region5
    $region4: #{tpu_custom_call.1} parent=1 // pred_region
      %s13 = ssub.s32 16, 16
      %14 = vsyncadd [#allocation3], %s13
      %s16 = sshll.u32 [#allocation2], 4
      %s17 = int_to_ptr.vmem [resolvable:$true] %s16
      %19 = dma.hbm_to_vmem [thread:$0]  %s0, 16, %s17, [#allocation3]
    $region5: #{tpu_custom_call.1} parent=1 // pred_fallthru
      _
    // Predicated region
    $region6: #{tpu_custom_call.1} parent=1 // pred_check
      _
    $region7: #{tpu_custom_call.1} parent=1 // pred_check_branch
      %21 = sbr.rel (0) target = $region9
    $region8: #{tpu_custom_call.1} parent=1 // pred_region
      %s23 = ssub.s32 2048, 2048
      %24 = vsyncadd [#allocation6], %s23
      %s25 = sshll.u32 [#allocation5], 4
      %s26 = int_to_ptr.vmem [resolvable:$true] %s25
      %31 = dma.hbm_to_vmem [thread:$0]  %s1, 2048, %s26, [#allocation6], 128, 128, 8
    $region9: #{tpu_custom_call.1} parent=1 // pred_fallthru
      _
    // Predicated region
    $region10: #{tpu_custom_call.1} parent=1 // pred_check
      _
    $region11: #{tpu_custom_call.1} parent=1 // pred_check_branch
      %33 = sbr.rel (0) target = $region13
    $region12: #{tpu_custom_call.1} parent=1 // pred_region
      %34 = dma.done [#allocation3], 16
    $region13: #{tpu_custom_call.1} parent=1 // pred_fallthru
      _
    // Predicated region
    $region14: #{tpu_custom_call.1} parent=1 // pred_check
      _
    $region15: #{tpu_custom_call.1} parent=1 // pred_check_branch
      %36 = sbr.rel (0) target = $region17
    $region16: #{tpu_custom_call.1} parent=1 // pred_region
      %37 = dma.done [#allocation6], 2048
    $region17: #{tpu_custom_call.1} parent=1 // pred_fallthru
      _
    %v38 = vld [vmem:[#allocation2] sm:$0x1]
    %vm39 = vcmp.gt.s32.totalorder %v38, 0
    %v40 = vsel %vm39, %v38, 0
    %vm41 = vcmp.lt.s32.totalorder %v40, 127
    %v42 = vsel %vm41, %v40, 127
    %v43 = vlaneseq
    %v44 = vshrl.u32 %v43, 7
    %v45 = vadd.s32 %v44, 8
    %v46 = vadd.s32 %v44, 16
    %v47 = vadd.s32 %v44, 24
    %v48 = vadd.s32 %v44, 32
    %v49 = vadd.s32 %v44, 40
    %v50 = vadd.s32 %v44, 48
    %v51 = vadd.s32 %v44, 56
    %v52 = vadd.s32 %v44, 64
    %v53 = vadd.s32 %v44, 72
    %v54 = vadd.s32 %v44, 80
    %v55 = vadd.s32 %v44, 88
    %v56 = vadd.s32 %v44, 96
    %v57 = vadd.s32 %v44, 104
    %v58 = vadd.s32 %v44, 112
    %v59 = vadd.s32 %v44, 120
    %v60 = vlaneseq
    %v61 = vshrl.u32 %v60, 7
    %v62 = vsub.s32 0, %v61
    %v63 = vrot.slane %v42, %v62
    %vm64 = vcmp.eq.s32.totalorder %v63, %v44
    %vm65 = vcmp.eq.s32.totalorder %v63, %v45
    %vm66 = vcmp.eq.s32.totalorder %v63, %v46
    %vm67 = vcmp.eq.s32.totalorder %v63, %v47
    %vm68 = vcmp.eq.s32.totalorder %v63, %v48
    %vm69 = vcmp.eq.s32.totalorder %v63, %v49
    %vm70 = vcmp.eq.s32.totalorder %v63, %v50
    %vm71 = vcmp.eq.s32.totalorder %v63, %v51
    %vm72 = vcmp.eq.s32.totalorder %v63, %v52
    %vm73 = vcmp.eq.s32.totalorder %v63, %v53
    %vm74 = vcmp.eq.s32.totalorder %v63, %v54
    %vm75 = vcmp.eq.s32.totalorder %v63, %v55
    %vm76 = vcmp.eq.s32.totalorder %v63, %v56
    %vm77 = vcmp.eq.s32.totalorder %v63, %v57
    %vm78 = vcmp.eq.s32.totalorder %v63, %v58
    %vm79 = vcmp.eq.s32.totalorder %v63, %v59
    %v80 = vsel %vm64, 1, 0
    %v81 = vsel %vm65, 1, 0
    %v82 = vsel %vm66, 1, 0
    %v83 = vsel %vm67, 1, 0
    %v84 = vsel %vm68, 1, 0
    %v85 = vsel %vm69, 1, 0
    %v86 = vsel %vm70, 1, 0
    %v87 = vsel %vm71, 1, 0
    %v88 = vsel %vm72, 1, 0
    %v89 = vsel %vm73, 1, 0
    %v90 = vsel %vm74, 1, 0
    %v91 = vsel %vm75, 1, 0
    %v92 = vsel %vm76, 1, 0
    %v93 = vsel %vm77, 1, 0
    %v94 = vsel %vm78, 1, 0
    %v95 = vsel %vm79, 1, 0
    %v96 = vcvt.s32.f32 %v80
    %v97 = vcvt.s32.f32 %v81
    %v98 = vcvt.s32.f32 %v82
    %v99 = vcvt.s32.f32 %v83
    %v100 = vcvt.s32.f32 %v84
    %v101 = vcvt.s32.f32 %v85
    %v102 = vcvt.s32.f32 %v86
    %v103 = vcvt.s32.f32 %v87
    %v104 = vcvt.s32.f32 %v88
    %v105 = vcvt.s32.f32 %v89
    %v106 = vcvt.s32.f32 %v90
    %v107 = vcvt.s32.f32 %v91
    %v108 = vcvt.s32.f32 %v92
    %v109 = vcvt.s32.f32 %v93
    %v110 = vcvt.s32.f32 %v94
    %v111 = vcvt.s32.f32 %v95
    %v112 = vld [vmem:[#allocation5] sm:$0xff]
    %v113 = vld [vmem:[#allocation5 + $0x8] sm:$0xff]
    %v114 = vld [vmem:[#allocation5 + $0x10] sm:$0xff]
    %v115 = vld [vmem:[#allocation5 + $0x18] sm:$0xff]
    %v116 = vld [vmem:[#allocation5 + $0x20] sm:$0xff]
    %v117 = vld [vmem:[#allocation5 + $0x28] sm:$0xff]
    %v118 = vld [vmem:[#allocation5 + $0x30] sm:$0xff]
    %v119 = vld [vmem:[#allocation5 + $0x38] sm:$0xff]
    %v120 = vld [vmem:[#allocation5 + $0x40] sm:$0xff]
    %v121 = vld [vmem:[#allocation5 + $0x48] sm:$0xff]
    %v122 = vld [vmem:[#allocation5 + $0x50] sm:$0xff]
    %v123 = vld [vmem:[#allocation5 + $0x58] sm:$0xff]
    %v124 = vld [vmem:[#allocation5 + $0x60] sm:$0xff]
    %v125 = vld [vmem:[#allocation5 + $0x68] sm:$0xff]
    %v126 = vld [vmem:[#allocation5 + $0x70] sm:$0xff]
    %v127 = vld [vmem:[#allocation5 + $0x78] sm:$0xff]
    %128 = vxpose.xlu0.b32.start [1/16] %v96, 128
    %129 = vxpose.xlu0.b32.cont [2/16] %v97, 128
    %130 = vxpose.xlu0.b32.cont [3/16] %v98, 128
    %131 = vxpose.xlu0.b32.cont [4/16] %v99, 128
    %132 = vxpose.xlu0.b32.cont [5/16] %v100, 128
    %133 = vxpose.xlu0.b32.cont [6/16] %v101, 128
    %134 = vxpose.xlu0.b32.cont [7/16] %v102, 128
    %135 = vxpose.xlu0.b32.cont [8/16] %v103, 128
    %136 = vxpose.xlu0.b32.cont [9/16] %v104, 128
    %137 = vxpose.xlu0.b32.cont [10/16] %v105, 128
    %138 = vxpose.xlu0.b32.cont [11/16] %v106, 128
    %139 = vxpose.xlu0.b32.cont [12/16] %v107, 128
    %140 = vxpose.xlu0.b32.cont [13/16] %v108, 128
    %141 = vxpose.xlu0.b32.cont [14/16] %v109, 128
    %142 = vxpose.xlu0.b32.cont [15/16] %v110, 128
    %143 = vxpose.xlu0.b32.end [16/16] %v111, 128
    %v144 = vpop.trf.xlu0
    %v145 = vpop.trf.xlu0
    %v146 = vpop.trf.xlu0
    %v147 = vpop.trf.xlu0
    %v148 = vpop.trf.xlu0
    %v149 = vpop.trf.xlu0
    %v150 = vpop.trf.xlu0
    %v151 = vpop.trf.xlu0
    %v152 = vpop.trf.xlu0
    %v153 = vpop.trf.xlu0
    %v154 = vpop.trf.xlu0
    %v155 = vpop.trf.xlu0
    %v156 = vpop.trf.xlu0
    %v157 = vpop.trf.xlu0
    %v158 = vpop.trf.xlu0
    %v159 = vpop.trf.xlu0
    %160 = vmatprep.subr.mxu0 0.0
    %161 = vmatpush1.msra.mxu0 %v112
    %162 = vmatprep.subr.mxu0 0.0
    %163 = vmatpush1.msra.mxu0 %v113
    %164 = vmatprep.subr.mxu0 0.0
    %165 = vmatpush1.msra.mxu0 %v114
    %166 = vmatprep.subr.mxu0 0.0
    %167 = vmatpush1.msra.mxu0 %v115
    %168 = vmatprep.subr.mxu0 0.0
    %169 = vmatpush1.msra.mxu0 %v116
    %170 = vmatprep.subr.mxu0 0.0
    %171 = vmatpush1.msra.mxu0 %v117
    %172 = vmatprep.subr.mxu0 0.0
    %173 = vmatpush1.msra.mxu0 %v118
    %174 = vmatprep.subr.mxu0 0.0
    %175 = vmatpush1.msra.mxu0 %v119
    %176 = vmatprep.subr.mxu0 0.0
    %177 = vmatpush1.msra.mxu0 %v120
    %178 = vmatprep.subr.mxu0 0.0
    %179 = vmatpush1.msra.mxu0 %v121
    %180 = vmatprep.subr.mxu0 0.0
    %181 = vmatpush1.msra.mxu0 %v122
    %182 = vmatprep.subr.mxu0 0.0
    %183 = vmatpush1.msra.mxu0 %v123
    %184 = vmatprep.subr.mxu0 0.0
    %185 = vmatpush1.msra.mxu0 %v124
    %186 = vmatprep.subr.mxu0 0.0
    %187 = vmatpush1.msra.mxu0 %v125
    %188 = vmatprep.subr.mxu0 0.0
    %189 = vmatpush1.msra.mxu0 %v126
    %190 = vmatprep.subr.mxu0 0.0
    %191 = vmatpush1.msra.mxu0 %v127
    %192 = vmatprep.subr.mxu0 0.0
    %193 = vmatpush1.msra.mxu0 0.0
    %194 = vmatprep.subr.mxu0 0.0
    %195 = vmatpush1.msra.mxu0 0.0
    %196 = vmatprep.subr.mxu0 0.0
    %197 = vmatpush1.msra.mxu0 0.0
    %198 = vmatprep.subr.mxu0 0.0
    %199 = vmatpush1.msra.mxu0 0.0
    %200 = vmatprep.subr.mxu0 0.0
    %201 = vmatpush1.msra.mxu0 0.0
    %202 = vmatprep.subr.mxu0 0.0
    %203 = vmatpush1.msra.mxu0 0.0
    %204 = vmatprep.subr.mxu0 0.0
    %205 = vmatpush1.msra.mxu0 0.0
    %206 = vmatprep.subr.mxu0 0.0
    %207 = vmatpush1.msra.mxu0 0.0
    %208 = vmatprep.subr.mxu0 0.0
    %209 = vmatpush1.msra.mxu0 0.0
    %210 = vmatprep.subr.mxu0 0.0
    %211 = vmatpush1.msra.mxu0 0.0
    %212 = vmatprep.subr.mxu0 0.0
    %213 = vmatpush1.msra.mxu0 0.0
    %214 = vmatprep.subr.mxu0 0.0
    %215 = vmatpush1.msra.mxu0 0.0
    %216 = vmatprep.subr.mxu0 0.0
    %217 = vmatpush1.msra.mxu0 0.0
    %218 = vmatprep.subr.mxu0 0.0
    %219 = vmatpush1.msra.mxu0 0.0
    %220 = vmatprep.subr.mxu0 0.0
    %221 = vmatpush1.msra.mxu0 0.0
    %222 = vmatprep.subr.mxu0 0.0
    %223 = vmatpush1.msra.mxu0 0.0
    %224 = vmatprep.mubr.f32.mxu0 0.0
    %225 = vmatmul.mubr.f32.gmra.mrb[0].mxu0 %v144
    %v226 = vpop.f32.mrb[0].mxu0
    %v227 = vadd.f32 0.0, %v226
    %v228 = vpop.f32.mrb[0].mxu0
    %229 = vmatprep.mubr.f32.mxu0 0.0
    %230 = vmatmul.mubr.f32.gmra.mrb[0].mxu0 %v145
    %v231 = vpop.f32.mrb[0].mxu0
    %v232 = vadd.f32 0.0, %v231
    %v233 = vpop.f32.mrb[0].mxu0
    %234 = vmatprep.mubr.f32.mxu0 0.0
    %235 = vmatmul.mubr.f32.gmra.mrb[0].mxu0 %v146
    %v236 = vpop.f32.mrb[0].mxu0
    %v237 = vadd.f32 0.0, %v236
    %v238 = vpop.f32.mrb[0].mxu0
    %239 = vmatprep.mubr.f32.mxu0 0.0
    %240 = vmatmul.mubr.f32.gmra.mrb[0].mxu0 %v147
    %v241 = vpop.f32.mrb[0].mxu0
    %v242 = vadd.f32 0.0, %v241
    %v243 = vpop.f32.mrb[0].mxu0
    %244 = vmatprep.mubr.f32.mxu0 0.0
    %245 = vmatmul.mubr.f32.gmra.mrb[0].mxu0 %v148
    %v246 = vpop.f32.mrb[0].mxu0
    %v247 = vadd.f32 0.0, %v246
    %v248 = vpop.f32.mrb[0].mxu0
    %249 = vmatprep.mubr.f32.mxu0 0.0
    %250 = vmatmul.mubr.f32.gmra.mrb[0].mxu0 %v149
    %v251 = vpop.f32.mrb[0].mxu0
    %v252 = vadd.f32 0.0, %v251
    %v253 = vpop.f32.mrb[0].mxu0
    %254 = vmatprep.mubr.f32.mxu0 0.0
    %255 = vmatmul.mubr.f32.gmra.mrb[0].mxu0 %v150
    %v256 = vpop.f32.mrb[0].mxu0
    %v257 = vadd.f32 0.0, %v256
    %v258 = vpop.f32.mrb[0].mxu0
    %259 = vmatprep.mubr.f32.mxu0 0.0
    %260 = vmatmul.mubr.f32.gmra.mrb[0].mxu0 %v151
    %v261 = vpop.f32.mrb[0].mxu0
    %v262 = vadd.f32 0.0, %v261
    %v263 = vpop.f32.mrb[0].mxu0
    %264 = vmatprep.mubr.f32.mxu0 0.0
    %265 = vmatmul.mubr.f32.gmra.mrb[0].mxu0 %v152
    %v266 = vpop.f32.mrb[0].mxu0
    %v267 = vadd.f32 0.0, %v266
    %v268 = vpop.f32.mrb[0].mxu0
    %269 = vmatprep.mubr.f32.mxu0 0.0
    %270 = vmatmul.mubr.f32.gmra.mrb[0].mxu0 %v153
    %v271 = vpop.f32.mrb[0].mxu0
    %v272 = vadd.f32 0.0, %v271
    %v273 = vpop.f32.mrb[0].mxu0
    %274 = vmatprep.mubr.f32.mxu0 0.0
    %275 = vmatmul.mubr.f32.gmra.mrb[0].mxu0 %v154
    %v276 = vpop.f32.mrb[0].mxu0
    %v277 = vadd.f32 0.0, %v276
    %v278 = vpop.f32.mrb[0].mxu0
    %279 = vmatprep.mubr.f32.mxu0 0.0
    %280 = vmatmul.mubr.f32.gmra.mrb[0].mxu0 %v155
    %v281 = vpop.f32.mrb[0].mxu0
    %v282 = vadd.f32 0.0, %v281
    %v283 = vpop.f32.mrb[0].mxu0
    %284 = vmatprep.mubr.f32.mxu0 0.0
    %285 = vmatmul.mubr.f32.gmra.mrb[0].mxu0 %v156
    %v286 = vpop.f32.mrb[0].mxu0
    %v287 = vadd.f32 0.0, %v286
    %v288 = vpop.f32.mrb[0].mxu0
    %289 = vmatprep.mubr.f32.mxu0 0.0
    %290 = vmatmul.mubr.f32.gmra.mrb[0].mxu0 %v157
    %v291 = vpop.f32.mrb[0].mxu0
    %v292 = vadd.f32 0.0, %v291
    %v293 = vpop.f32.mrb[0].mxu0
    %294 = vmatprep.mubr.f32.mxu0 0.0
    %295 = vmatmul.mubr.f32.gmra.mrb[0].mxu0 %v158
    %v296 = vpop.f32.mrb[0].mxu0
    %v297 = vadd.f32 0.0, %v296
    %v298 = vpop.f32.mrb[0].mxu0
    %299 = vmatprep.mubr.f32.mxu0 0.0
    %300 = vmatmul.mubr.f32.gmra.mrb[0].mxu0 %v159
    %v301 = vpop.f32.mrb[0].mxu0
    %v302 = vadd.f32 0.0, %v301
    %v303 = vpop.f32.mrb[0].mxu0
    %304 = vdwg.mxu0
    %305 = vst [vmem:[#allocation7] sm:$0xff] %v227
    %306 = vst [vmem:[#allocation7 + $0x8] sm:$0xff] %v232
    %307 = vst [vmem:[#allocation7 + $0x10] sm:$0xff] %v237
    %308 = vst [vmem:[#allocation7 + $0x18] sm:$0xff] %v242
    %309 = vst [vmem:[#allocation7 + $0x20] sm:$0xff] %v247
    %310 = vst [vmem:[#allocation7 + $0x28] sm:$0xff] %v252
    %311 = vst [vmem:[#allocation7 + $0x30] sm:$0xff] %v257
    %312 = vst [vmem:[#allocation7 + $0x38] sm:$0xff] %v262
    %313 = vst [vmem:[#allocation7 + $0x40] sm:$0xff] %v267
    %314 = vst [vmem:[#allocation7 + $0x48] sm:$0xff] %v272
    %315 = vst [vmem:[#allocation7 + $0x50] sm:$0xff] %v277
    %316 = vst [vmem:[#allocation7 + $0x58] sm:$0xff] %v282
    %317 = vst [vmem:[#allocation7 + $0x60] sm:$0xff] %v287
    %318 = vst [vmem:[#allocation7 + $0x68] sm:$0xff] %v292
    %319 = vst [vmem:[#allocation7 + $0x70] sm:$0xff] %v297
    %320 = vst [vmem:[#allocation7 + $0x78] sm:$0xff] %v302
    // Predicated region
    $region18: #{tpu_custom_call.1} parent=1 // pred_check
      _
    $region19: #{tpu_custom_call.1} parent=1 // pred_check_branch
      %322 = sbr.rel (0) target = $region21
    $region20: #{tpu_custom_call.1} parent=1 // pred_region
      %s324 = ssub.s32 2048, 2048
      %325 = vsyncadd [#allocation4], %s324
      %s326 = sshll.u32 [#allocation7], 4
      %s327 = int_to_ptr.vmem [resolvable:$true] %s326
      %332 = dma.vmem_to_hbm [thread:$0]  %s327, 2048, %s2, [#allocation4], 128, 128, 8
    $region21: #{tpu_custom_call.1} parent=1 // pred_fallthru
      _
    // Predicated region
    $region22: #{tpu_custom_call.1} parent=1 // pred_check
      _
    $region23: #{tpu_custom_call.1} parent=1 // pred_check_branch
      %334 = sbr.rel (0) target = $region25
    $region24: #{tpu_custom_call.1} parent=1 // pred_region
      %335 = dma.done [#allocation4], 2048
    $region25: #{tpu_custom_call.1} parent=1 // pred_fallthru
      _
    %336 = vsyncpa [#allocation3], 1
    %337 = vsyncpa [#allocation6], 1
    %338 = vsyncpa [#allocation4], 1

</llo_original>
